<compile_context>
chip_gen: v6e
topology: v6e:2x2x1
jax: 0.10.0
libtpu: 0.0.40
codegen_flags: <defaults>
</compile_context>

<pallas_src>
import functools

import jax
import jax.numpy as jnp
import numpy as np
from jax.experimental import pallas as pl
from jax.experimental.pallas import tpu as pltpu

D_IN, D_H1, D_H2, D_LAT = 20 * 20, 15 * 15, 10 * 10, 5 * 5   # 400, 225, 100, 25
LAYER_DIMS = [(D_IN, D_H1), (D_H1, D_H2), (D_H2, D_LAT),
              (D_LAT, D_H2), (D_H2, D_H1), (D_H1, D_IN)]

LANE = 128
SUBLANE = 8


def _round_up(x, m):
    return ((x + m - 1) // m) * m


# Only internal hidden/latent dims are lane-padded; external dims (400 in,
# 25 latent out, 400 decoded out) stay unpadded so no wrapper pad/slice pass
# over the big activations is required.
P_H1 = _round_up(D_H1, LANE)     # 256
P_H2 = _round_up(D_H2, LANE)     # 128
P_LAT = _round_up(D_LAT, LANE)   # 128
PADDED_LAYER_DIMS = [(D_IN, P_H1), (P_H1, P_H2), (P_H2, P_LAT),
                     (P_LAT, P_H2), (P_H2, P_H1), (P_H1, D_IN)]


# ---------------------------------------------------------------------------
# Kernel
# ---------------------------------------------------------------------------
def autoencoder_kernel(x_ref,
                       w1_ref, b1_ref, w2_ref, b2_ref, w3_ref, b3_ref,
                       w4_ref, b4_ref, w5_ref, b5_ref, w6_ref, b6_ref,
                       enc_ref, dec_ref, *, act_dtype):
    def lin(h, w_ref, b_ref):
        w = w_ref[...]
        # Matmul operands in the weight dtype (bf16 fast path), f32 accumulate,
        # bias add in f32.
        return jnp.dot(h.astype(w.dtype), w,
                       preferred_element_type=jnp.float32) + b_ref[...]

    x = x_ref[...]                                              # (tb, 400)
    # encoder
    h = jnp.tanh(lin(x, w1_ref, b1_ref).astype(act_dtype))      # (tb, 256)
    h = jnp.tanh(lin(h, w2_ref, b2_ref).astype(act_dtype))      # (tb, 128)
    enc = lin(h, w3_ref, b3_ref)                                # (tb, 128) f32,
    #                                                             cols >= 25 are exactly 0
    # decoder
    h = jnp.tanh(lin(enc, w4_ref, b4_ref).astype(act_dtype))    # (tb, 128)
    h = jnp.tanh(lin(h, w5_ref, b5_ref).astype(act_dtype))      # (tb, 256)
    dec = jax.nn.sigmoid(lin(h, w6_ref, b6_ref).astype(act_dtype))  # (tb, 400)

    enc_ref[...] = enc[:, :D_LAT].astype(enc_ref.dtype)
    dec_ref[...] = dec.astype(dec_ref.dtype)


# ---------------------------------------------------------------------------
# Parameters
# ---------------------------------------------------------------------------
def make_params(key):
    """PyTorch nn.Linear-style uniform init, deterministic via PRNGKey.

    Weights stored (in_features, out_features) so y = x @ W + b.
    """
    params = []
    for i, (din, dout) in enumerate(LAYER_DIMS):
        kw, kb = jax.random.split(jax.random.fold_in(key, i))
        bound = 1.0 / float(np.sqrt(din))
        w = jax.random.uniform(kw, (din, dout), jnp.float32, -bound, bound)
        b = jax.random.uniform(kb, (1, dout), jnp.float32, -bound, bound)
        params += [w, b]
    return params


def prepare_params(params, use_bf16=True):
    """Zero-pad internal hidden/latent dims to 128 multiples and (optionally)
    cast the weights to bf16.  Call once and reuse across forward calls."""
    w_dtype = jnp.bfloat16 if use_bf16 else jnp.float32
    padded = []
    for i, (din, dout) in enumerate(LAYER_DIMS):
        pin, pout = PADDED_LAYER_DIMS[i]
        w, b = params[2 * i], params[2 * i + 1]
        w_p = jnp.pad(w, ((0, pin - din), (0, pout - dout))).astype(w_dtype)
        b_p = jnp.pad(jnp.asarray(b, jnp.float32).reshape(1, dout),
                      ((0, 0), (0, pout - dout)))
        padded += [w_p, b_p]
    return padded


# ---------------------------------------------------------------------------
# Generation-aware tiling / activation-dtype selection
# ---------------------------------------------------------------------------
def _device_kind():
    try:
        return jax.devices()[0].device_kind.lower()
    except Exception:
        return ""


def _num_tensorcores_per_chip():
    kind = _device_kind()
    if "v7" in kind or "7x" in kind:
        return 2
    return 1


def _supports_bf16_elementwise():
    # v6e / v7x have bf16 VPU+EUP; v5e (and older / unknown) do not -> keep
    # the tanh/sigmoid chain in f32 there.
    kind = _device_kind()
    return ("v6" in kind) or ("v7" in kind) or ("7x" in kind)


def _auto_tile(batch):
    """Pick the batch tile: big tiles on single-TC chips, >=2 even grid steps
    on 2-TC chips so the 'parallel' axis actually splits the work."""
    n_tc = _num_tensorcores_per_chip()
    tb = min(512, _round_up(max(batch, SUBLANE), SUBLANE))
    if n_tc > 1 and batch > 256:
        tb = min(tb, _round_up(-(-batch // n_tc), SUBLANE))
    return max(SUBLANE, _round_up(tb, SUBLANE))


# ---------------------------------------------------------------------------
# Forward
# ---------------------------------------------------------------------------
@functools.partial(jax.jit, static_argnames=("tb", "bf16_act"))
def _autoencoder_forward_jit(x, pparams, tb, bf16_act):
    B = x.shape[0]
    out_dtype = x.dtype          # enc/dec follow x.dtype (f32 for f32 inputs)
    Bp = _round_up(B, tb)

    # Only the batch dim is ever padded (and only when B % tb != 0);
    # the 400-wide feature dim goes into the kernel unpadded.
    x_p = x if Bp == B else jnp.pad(x, ((0, Bp - B), (0, 0)))

    def const_spec(p):
        nd = p.ndim
        # Constant block index across the grid -> resident, not re-DMA'd.
        return pl.BlockSpec(p.shape, lambda i, _nd=nd: (0,) * _nd)

    in_specs = [pl.BlockSpec((tb, D_IN), lambda i: (i, 0))]
    in_specs += [const_spec(p) for p in pparams]
    out_specs = (pl.BlockSpec((tb, D_LAT), lambda i: (i, 0)),
                 pl.BlockSpec((tb, D_IN), lambda i: (i, 0)))

    # Advisory cost estimate for XLA's scheduler.
    w_bytes = sum(int(np.prod(p.shape)) * p.dtype.itemsize for p in pparams)
    flops = 2 * Bp * sum(din * dout for din, dout in LAYER_DIMS)
    transcendentals = Bp * (D_H1 + D_H2 + D_H2 + D_H1 + D_IN)
    bytes_accessed = (Bp * D_IN * x_p.dtype.itemsize
                      + Bp * D_LAT * jnp.dtype(out_dtype).itemsize
                      + Bp * D_IN * jnp.dtype(out_dtype).itemsize
                      + w_bytes)
    cost = pl.CostEstimate(flops=int(flops),
                           transcendentals=int(transcendentals),
                           bytes_accessed=int(bytes_accessed))

    kernel = functools.partial(
        autoencoder_kernel,
        act_dtype=jnp.bfloat16 if bf16_act else jnp.float32)

    enc_p, dec_p = pl.pallas_call(
        kernel,
        out_shape=(jax.ShapeDtypeStruct((Bp, D_LAT), out_dtype),
                   jax.ShapeDtypeStruct((Bp, D_IN), out_dtype)),
        grid=(Bp // tb,),
        in_specs=in_specs,
        out_specs=out_specs,
        compiler_params=pltpu.CompilerParams(
            dimension_semantics=("parallel",)),
        cost_estimate=cost,
    )(x_p, *pparams)

    if Bp != B:
        enc_p = enc_p[:B]
        dec_p = dec_p[:B]
    return enc_p, dec_p


def autoencoder_forward(x, prepared_params, tb=None, bf16_act=None):
    """Fused 6-layer autoencoder forward.

    prepared_params: output of prepare_params() (padded / cast once, reused).
    tb:       batch tile; None -> generation-aware auto pick.
    bf16_act: run tanh/sigmoid in bf16 (only sensible where the weights are
              bf16 and the chip has bf16 VPU/EUP); None -> auto.
    """
    if tb is None:
        tb = _auto_tile(x.shape[0])
    if bf16_act is None:
        bf16_act = (prepared_params[0].dtype == jnp.bfloat16
                    and _supports_bf16_elementwise())
    return _autoencoder_forward_jit(x, prepared_params, int(tb), bool(bf16_act))


def autoencoder_ref(x, params):
    """Pure-JAX f32 reference of the PyTorch forward."""
    w1, b1, w2, b2, w3, b3, w4, b4, w5, b5, w6, b6 = params
    h = jnp.tanh(x @ w1 + b1)
    h = jnp.tanh(h @ w2 + b2)
    enc = h @ w3 + b3
    h = jnp.tanh(enc @ w4 + b4)
    h = jnp.tanh(h @ w5 + b5)
    dec = jax.nn.sigmoid(h @ w6 + b6)
    return enc, dec


if __name__ == "__main__":
    key = jax.random.PRNGKey(0)
    kx, kp = jax.random.split(key)
    params = make_params(kp)

    # ---- exact f32 path, tiny batch (latency-bound, single grid step) ----
    pparams_f32 = prepare_params(params, use_bf16=False)
    B_small = 8
    x_small = jax.random.uniform(kx, (B_small, D_IN), jnp.float32)
    enc, dec = autoencoder_forward(x_small, pparams_f32, bf16_act=False)
    jax.block_until_ready((enc, dec))
    enc_r, dec_r = autoencoder_ref(x_small, params)
    np.testing.assert_allclose(np.asarray(enc), np.asarray(enc_r),
                               rtol=1e-5, atol=1e-5)
    np.testing.assert_allclose(np.asarray(dec), np.asarray(dec_r),
                               rtol=1e-5, atol=1e-5)

    # ---- default bf16 fast path, non-multiple batch (tiled + batch pad) ----
    pparams_bf16 = prepare_params(params, use_bf16=True)
    B_big = 500
    x_big = jax.random.uniform(jax.random.fold_in(kx, 1),
                               (B_big, D_IN), jnp.float32)
    enc, dec = autoencoder_forward(x_big, pparams_bf16)
    jax.block_until_ready((enc, dec))
    enc_r, dec_r = autoencoder_ref(x_big, params)
    np.testing.assert_allclose(np.asarray(enc), np.asarray(enc_r),
                               rtol=5e-2, atol=5e-2)
    np.testing.assert_allclose(np.asarray(dec), np.asarray(dec_r),
                               rtol=5e-2, atol=2e-2)

    print("KERNEL_OK")
</pallas_src>

<mosaic_0001>
module attributes {stable_mosaic.version = 11 : i64} {
  func.func @autoencoder_kernel(%arg0: i32, %arg1: memref<8x400xf32, #tpu.memory_space<vmem>>, %arg2: memref<400x256xf32, #tpu.memory_space<vmem>>, %arg3: memref<1x256xf32, #tpu.memory_space<vmem>>, %arg4: memref<256x128xf32, #tpu.memory_space<vmem>>, %arg5: memref<1x128xf32, #tpu.memory_space<vmem>>, %arg6: memref<128x128xf32, #tpu.memory_space<vmem>>, %arg7: memref<1x128xf32, #tpu.memory_space<vmem>>, %arg8: memref<128x128xf32, #tpu.memory_space<vmem>>, %arg9: memref<1x128xf32, #tpu.memory_space<vmem>>, %arg10: memref<128x256xf32, #tpu.memory_space<vmem>>, %arg11: memref<1x256xf32, #tpu.memory_space<vmem>>, %arg12: memref<256x400xf32, #tpu.memory_space<vmem>>, %arg13: memref<1x400xf32, #tpu.memory_space<vmem>>, %arg14: memref<8x25xf32, #tpu.memory_space<vmem>>, %arg15: memref<8x400xf32, #tpu.memory_space<vmem>>) attributes {dimension_semantics = [#tpu.dimension_semantics<parallel>], iteration_bounds = array<i64: 1>, scalar_prefetch = 0 : i64, scratch_operands = 0 : i64, tpu.core_type = #tpu.core_type<tc>, window_params = [{transform_indices = @transform_0, window_bounds = array<i64: 8, 400>}, {pipeline_mode = #tpu.pipeline_mode<synchronous>, transform_indices = @transform_1, window_bounds = array<i64: 400, 256>}, {pipeline_mode = #tpu.pipeline_mode<synchronous>, transform_indices = @transform_2, window_bounds = array<i64: 1, 256>}, {pipeline_mode = #tpu.pipeline_mode<synchronous>, transform_indices = @transform_3, window_bounds = array<i64: 256, 128>}, {pipeline_mode = #tpu.pipeline_mode<synchronous>, transform_indices = @transform_4, window_bounds = array<i64: 1, 128>}, {pipeline_mode = #tpu.pipeline_mode<synchronous>, transform_indices = @transform_5, window_bounds = array<i64: 128, 128>}, {pipeline_mode = #tpu.pipeline_mode<synchronous>, transform_indices = @transform_6, window_bounds = array<i64: 1, 128>}, {pipeline_mode = #tpu.pipeline_mode<synchronous>, transform_indices = @transform_7, window_bounds = array<i64: 128, 128>}, {pipeline_mode = #tpu.pipeline_mode<synchronous>, transform_indices = @transform_8, window_bounds = array<i64: 1, 128>}, {pipeline_mode = #tpu.pipeline_mode<synchronous>, transform_indices = @transform_9, window_bounds = array<i64: 128, 256>}, {pipeline_mode = #tpu.pipeline_mode<synchronous>, transform_indices = @transform_10, window_bounds = array<i64: 1, 256>}, {pipeline_mode = #tpu.pipeline_mode<synchronous>, transform_indices = @transform_11, window_bounds = array<i64: 256, 400>}, {pipeline_mode = #tpu.pipeline_mode<synchronous>, transform_indices = @transform_12, window_bounds = array<i64: 1, 400>}, {transform_indices = @transform_13, window_bounds = array<i64: 8, 25>}, {transform_indices = @transform_14, window_bounds = array<i64: 8, 400>}]} {
    %c0 = arith.constant 0 : index
    %c0_0 = arith.constant 0 : index
    %0 = vector.load %arg1[%c0, %c0_0] : memref<8x400xf32, #tpu.memory_space<vmem>>, vector<8x400xf32>
    %c0_1 = arith.constant 0 : index
    %c0_2 = arith.constant 0 : index
    %1 = vector.load %arg2[%c0_1, %c0_2] : memref<400x256xf32, #tpu.memory_space<vmem>>, vector<400x256xf32>
    %cst = arith.constant dense<0.000000e+00> : vector<8x256xf32>
    %2 = tpu.matmul %0, %1, %cst {dimension_numbers = #tpu.dot_dimension_numbers<[1], [0], [0], [1], [0, 0, 1, 1], [], []>} : vector<8x400xf32>, vector<400x256xf32>, vector<8x256xf32> -> vector<8x256xf32>
    %c0_3 = arith.constant 0 : index
    %c0_4 = arith.constant 0 : index
    %3 = vector.load %arg3[%c0_3, %c0_4] : memref<1x256xf32, #tpu.memory_space<vmem>>, vector<1x256xf32>
    %4 = vector.broadcast %3 : vector<1x256xf32> to vector<8x256xf32>
    %5 = arith.addf %2, %4 : vector<8x256xf32>
    %6 = math.tanh %5 : vector<8x256xf32>
    %c0_5 = arith.constant 0 : index
    %c0_6 = arith.constant 0 : index
    %7 = vector.load %arg4[%c0_5, %c0_6] : memref<256x128xf32, #tpu.memory_space<vmem>>, vector<256x128xf32>
    %cst_7 = arith.constant dense<0.000000e+00> : vector<8x128xf32>
    %8 = tpu.matmul %6, %7, %cst_7 {dimension_numbers = #tpu.dot_dimension_numbers<[1], [0], [0], [1], [0, 0, 1, 1], [], []>} : vector<8x256xf32>, vector<256x128xf32>, vector<8x128xf32> -> vector<8x128xf32>
    %c0_8 = arith.constant 0 : index
    %c0_9 = arith.constant 0 : index
    %9 = vector.load %arg5[%c0_8, %c0_9] : memref<1x128xf32, #tpu.memory_space<vmem>>, vector<1x128xf32>
    %10 = vector.broadcast %9 : vector<1x128xf32> to vector<8x128xf32>
    %11 = arith.addf %8, %10 : vector<8x128xf32>
    %12 = math.tanh %11 : vector<8x128xf32>
    %c0_10 = arith.constant 0 : index
    %c0_11 = arith.constant 0 : index
    %13 = vector.load %arg6[%c0_10, %c0_11] : memref<128x128xf32, #tpu.memory_space<vmem>>, vector<128x128xf32>
    %cst_12 = arith.constant dense<0.000000e+00> : vector<8x128xf32>
    %14 = tpu.matmul %12, %13, %cst_12 {dimension_numbers = #tpu.dot_dimension_numbers<[1], [0], [0], [1], [0, 0, 1, 1], [], []>} : vector<8x128xf32>, vector<128x128xf32>, vector<8x128xf32> -> vector<8x128xf32>
    %c0_13 = arith.constant 0 : index
    %c0_14 = arith.constant 0 : index
    %15 = vector.load %arg7[%c0_13, %c0_14] : memref<1x128xf32, #tpu.memory_space<vmem>>, vector<1x128xf32>
    %16 = vector.broadcast %15 : vector<1x128xf32> to vector<8x128xf32>
    %17 = arith.addf %14, %16 : vector<8x128xf32>
    %c0_15 = arith.constant 0 : index
    %c0_16 = arith.constant 0 : index
    %18 = vector.load %arg8[%c0_15, %c0_16] : memref<128x128xf32, #tpu.memory_space<vmem>>, vector<128x128xf32>
    %cst_17 = arith.constant dense<0.000000e+00> : vector<8x128xf32>
    %19 = tpu.matmul %17, %18, %cst_17 {dimension_numbers = #tpu.dot_dimension_numbers<[1], [0], [0], [1], [0, 0, 1, 1], [], []>} : vector<8x128xf32>, vector<128x128xf32>, vector<8x128xf32> -> vector<8x128xf32>
    %c0_18 = arith.constant 0 : index
    %c0_19 = arith.constant 0 : index
    %20 = vector.load %arg9[%c0_18, %c0_19] : memref<1x128xf32, #tpu.memory_space<vmem>>, vector<1x128xf32>
    %21 = vector.broadcast %20 : vector<1x128xf32> to vector<8x128xf32>
    %22 = arith.addf %19, %21 : vector<8x128xf32>
    %23 = math.tanh %22 : vector<8x128xf32>
    %c0_20 = arith.constant 0 : index
    %c0_21 = arith.constant 0 : index
    %24 = vector.load %arg10[%c0_20, %c0_21] : memref<128x256xf32, #tpu.memory_space<vmem>>, vector<128x256xf32>
    %cst_22 = arith.constant dense<0.000000e+00> : vector<8x256xf32>
    %25 = tpu.matmul %23, %24, %cst_22 {dimension_numbers = #tpu.dot_dimension_numbers<[1], [0], [0], [1], [0, 0, 1, 1], [], []>} : vector<8x128xf32>, vector<128x256xf32>, vector<8x256xf32> -> vector<8x256xf32>
    %c0_23 = arith.constant 0 : index
    %c0_24 = arith.constant 0 : index
    %26 = vector.load %arg11[%c0_23, %c0_24] : memref<1x256xf32, #tpu.memory_space<vmem>>, vector<1x256xf32>
    %27 = vector.broadcast %26 : vector<1x256xf32> to vector<8x256xf32>
    %28 = arith.addf %25, %27 : vector<8x256xf32>
    %29 = math.tanh %28 : vector<8x256xf32>
    %c0_25 = arith.constant 0 : index
    %c0_26 = arith.constant 0 : index
    %30 = vector.load %arg12[%c0_25, %c0_26] : memref<256x400xf32, #tpu.memory_space<vmem>>, vector<256x400xf32>
    %cst_27 = arith.constant dense<0.000000e+00> : vector<8x400xf32>
    %31 = tpu.matmul %29, %30, %cst_27 {dimension_numbers = #tpu.dot_dimension_numbers<[1], [0], [0], [1], [0, 0, 1, 1], [], []>} : vector<8x256xf32>, vector<256x400xf32>, vector<8x400xf32> -> vector<8x400xf32>
    %c0_28 = arith.constant 0 : index
    %c0_29 = arith.constant 0 : index
    %32 = vector.load %arg13[%c0_28, %c0_29] : memref<1x400xf32, #tpu.memory_space<vmem>>, vector<1x400xf32>
    %33 = vector.broadcast %32 : vector<1x400xf32> to vector<8x400xf32>
    %34 = arith.addf %31, %33 : vector<8x400xf32>
    %35 = arith.negf %34 : vector<8x400xf32>
    %36 = math.exp %35 : vector<8x400xf32>
    %cst_30 = arith.constant 1.000000e+00 : f32
    %37 = vector.broadcast %cst_30 : f32 to vector<8x400xf32>
    %38 = arith.addf %37, %36 : vector<8x400xf32>
    %39 = arith.divf %37, %38 : vector<8x400xf32>
    %40 = vector.extract_strided_slice %17 {offsets = [0, 0], sizes = [8, 25], strides = [1, 1]} : vector<8x128xf32> to vector<8x25xf32>
    %c0_31 = arith.constant 0 : index
    %c0_32 = arith.constant 0 : index
    %41 = vector.load %arg14[%c0_31, %c0_32] : memref<8x25xf32, #tpu.memory_space<vmem>>, vector<8x25xf32>
    tpu.vector_store %arg14[%c0_31, %c0_32], %40 {strides = array<i32>} : memref<8x25xf32, #tpu.memory_space<vmem>>, vector<8x25xf32>,
    %c0_33 = arith.constant 0 : index
    %c0_34 = arith.constant 0 : index
    %42 = vector.load %arg15[%c0_33, %c0_34] : memref<8x400xf32, #tpu.memory_space<vmem>>, vector<8x400xf32>
    tpu.vector_store %arg15[%c0_33, %c0_34], %39 {strides = array<i32>} : memref<8x400xf32, #tpu.memory_space<vmem>>, vector<8x400xf32>,
    return
  }
  func.func @transform_0(%arg0: i32) -> (i32, i32) {
    %c0_i32 = arith.constant 0 : i32
    %c0_i32_0 = arith.constant 0 : i32
    return %arg0, %c0_i32 : i32, i32
  }
  func.func @transform_1(%arg0: i32) -> (i32, i32) {
    %c0_i32 = arith.constant 0 : i32
    %c0_i32_0 = arith.constant 0 : i32
    %c0_i32_1 = arith.constant 0 : i32
    return %c0_i32, %c0_i32_0 : i32, i32
  }
  func.func @transform_2(%arg0: i32) -> (i32, i32) {
    %c0_i32 = arith.constant 0 : i32
    %c0_i32_0 = arith.constant 0 : i32
    %c0_i32_1 = arith.constant 0 : i32
    return %c0_i32, %c0_i32_0 : i32, i32
  }
  func.func @transform_3(%arg0: i32) -> (i32, i32) {
    %c0_i32 = arith.constant 0 : i32
    %c0_i32_0 = arith.constant 0 : i32
    %c0_i32_1 = arith.constant 0 : i32
    return %c0_i32, %c0_i32_0 : i32, i32
  }
  func.func @transform_4(%arg0: i32) -> (i32, i32) {
    %c0_i32 = arith.constant 0 : i32
    %c0_i32_0 = arith.constant 0 : i32
    %c0_i32_1 = arith.constant 0 : i32
    return %c0_i32, %c0_i32_0 : i32, i32
  }
  func.func @transform_5(%arg0: i32) -> (i32, i32) {
    %c0_i32 = arith.constant 0 : i32
    %c0_i32_0 = arith.constant 0 : i32
    %c0_i32_1 = arith.constant 0 : i32
    return %c0_i32, %c0_i32_0 : i32, i32
  }
  func.func @transform_6(%arg0: i32) -> (i32, i32) {
    %c0_i32 = arith.constant 0 : i32
    %c0_i32_0 = arith.constant 0 : i32
    %c0_i32_1 = arith.constant 0 : i32
    return %c0_i32, %c0_i32_0 : i32, i32
  }
  func.func @transform_7(%arg0: i32) -> (i32, i32) {
    %c0_i32 = arith.constant 0 : i32
    %c0_i32_0 = arith.constant 0 : i32
    %c0_i32_1 = arith.constant 0 : i32
    return %c0_i32, %c0_i32_0 : i32, i32
  }
  func.func @transform_8(%arg0: i32) -> (i32, i32) {
    %c0_i32 = arith.constant 0 : i32
    %c0_i32_0 = arith.constant 0 : i32
    %c0_i32_1 = arith.constant 0 : i32
    return %c0_i32, %c0_i32_0 : i32, i32
  }
  func.func @transform_9(%arg0: i32) -> (i32, i32) {
    %c0_i32 = arith.constant 0 : i32
    %c0_i32_0 = arith.constant 0 : i32
    %c0_i32_1 = arith.constant 0 : i32
    return %c0_i32, %c0_i32_0 : i32, i32
  }
  func.func @transform_10(%arg0: i32) -> (i32, i32) {
    %c0_i32 = arith.constant 0 : i32
    %c0_i32_0 = arith.constant 0 : i32
    %c0_i32_1 = arith.constant 0 : i32
    return %c0_i32, %c0_i32_0 : i32, i32
  }
  func.func @transform_11(%arg0: i32) -> (i32, i32) {
    %c0_i32 = arith.constant 0 : i32
    %c0_i32_0 = arith.constant 0 : i32
    %c0_i32_1 = arith.constant 0 : i32
    return %c0_i32, %c0_i32_0 : i32, i32
  }
  func.func @transform_12(%arg0: i32) -> (i32, i32) {
    %c0_i32 = arith.constant 0 : i32
    %c0_i32_0 = arith.constant 0 : i32
    %c0_i32_1 = arith.constant 0 : i32
    return %c0_i32, %c0_i32_0 : i32, i32
  }
  func.func @transform_13(%arg0: i32) -> (i32, i32) {
    %c0_i32 = arith.constant 0 : i32
    %c0_i32_0 = arith.constant 0 : i32
    return %arg0, %c0_i32 : i32, i32
  }
  func.func @transform_14(%arg0: i32) -> (i32, i32) {
    %c0_i32 = arith.constant 0 : i32
    %c0_i32_0 = arith.constant 0 : i32
    return %arg0, %c0_i32 : i32, i32
  }
}

</mosaic_0001>

<llo_original>
// kernel: _autoencoder_forward_jit.1
$region0: #{_autoencoder_forward_jit.1}
  #allocation0 [shape = 'u32[]', space=smem, size = 0x4, offset = 0x4, fixed_abs, tag = 'smem constant byte address 0x4 - core index']
  #allocation1 [shape = 'u32[144,128]{1,0:T(1,128)}', space=vmem, size = 0x12000, scoped, tag = 'internal scratch']
  %s0 = inlined_call_operand.vmem [shape: f32[8,400], index: 0, kind: input, shape index: {}]
  %s1 = inlined_call_operand.vmem [shape: f32[400,256], index: 1, kind: input, shape index: {}]
  %s2 = inlined_call_operand.vmem [shape: f32[1,256], index: 2, kind: input, shape index: {}]
  %s3 = inlined_call_operand.vmem [shape: f32[256,128], index: 3, kind: input, shape index: {}]
  %s4 = inlined_call_operand.vmem [shape: f32[1,128], index: 4, kind: input, shape index: {}]
  %s5 = inlined_call_operand.vmem [shape: f32[128,128], index: 5, kind: input, shape index: {}]
  %s6 = inlined_call_operand.vmem [shape: f32[1,128], index: 6, kind: input, shape index: {}]
  %s7 = inlined_call_operand.vmem [shape: f32[128,128], index: 7, kind: input, shape index: {}]
  %s8 = inlined_call_operand.vmem [shape: f32[1,128], index: 8, kind: input, shape index: {}]
  %s9 = inlined_call_operand.vmem [shape: f32[128,256], index: 9, kind: input, shape index: {}]
  %s10 = inlined_call_operand.vmem [shape: f32[1,256], index: 10, kind: input, shape index: {}]
  %s11 = inlined_call_operand.vmem [shape: f32[256,400], index: 11, kind: input, shape index: {}]
  %s12 = inlined_call_operand.vmem [shape: f32[1,400], index: 12, kind: input, shape index: {}]
  %s13 = inlined_call_operand.hbm [shape: f32[8,25], index: 13, kind: output, shape index: {0}]
  %s14 = inlined_call_operand.hbm [shape: f32[8,400], index: 14, kind: output, shape index: {1}]
  %15 = xla_tuple %s13, %s14
  %s16 = sld [smem:[#allocation0]]
  $region70: #{_autoencoder_forward_jit.1} parent=0
    _
  %s18 = ssub.s32 1, %s16
  %s19 = scalar_select 0, %s18, %s16
  $region1: #{_autoencoder_forward_jit.1} parent=0
    #allocation2 [shape = 'u8[4096]{0}', space=vmem, size = 0x1000, scoped, tag = 'output window, operand 0, single buffered']
    #allocation3 [shape = 's32[1]{0}', space=sflag, size = 0x4, scoped, tag = 'scoped memory for _autoencoder_forward_jit.1']
    #allocation4 [shape = 'u8[16384]{0}', space=vmem, size = 0x4000, scoped, tag = 'output window, operand 1, single buffered']
    #allocation5 [shape = 's32[1]{0}', space=sflag, size = 0x4, scoped, tag = 'scoped memory for _autoencoder_forward_jit.1']
    %20 = vsyncpa [#allocation3], 0
    %21 = vsyncpa [#allocation5], 0
    // Predicated region
    $region2: #{_autoencoder_forward_jit.1} parent=1 // pred_check
      _
    $region3: #{_autoencoder_forward_jit.1} parent=1 // pred_check_branch
      %23 = sbr.rel (0) target = $region5
    $region4: #{_autoencoder_forward_jit.1} parent=1 // pred_region
      _
    $region5: #{_autoencoder_forward_jit.1} parent=1 // pred_fallthru
      _
    // Predicated region
    $region6: #{_autoencoder_forward_jit.1} parent=1 // pred_check
      _
    $region7: #{_autoencoder_forward_jit.1} parent=1 // pred_check_branch
      %25 = sbr.rel (0) target = $region9
    $region8: #{_autoencoder_forward_jit.1} parent=1 // pred_region
      _
    $region9: #{_autoencoder_forward_jit.1} parent=1 // pred_fallthru
      _
    // Predicated region
    $region10: #{_autoencoder_forward_jit.1} parent=1 // pred_check
      _
    $region11: #{_autoencoder_forward_jit.1} parent=1 // pred_check_branch
      %27 = sbr.rel (0) target = $region13
    $region12: #{_autoencoder_forward_jit.1} parent=1 // pred_region
      _
    $region13: #{_autoencoder_forward_jit.1} parent=1 // pred_fallthru
      _
    // Predicated region
    $region14: #{_autoencoder_forward_jit.1} parent=1 // pred_check
      _
    $region15: #{_autoencoder_forward_jit.1} parent=1 // pred_check_branch
      %29 = sbr.rel (0) target = $region17
    $region16: #{_autoencoder_forward_jit.1} parent=1 // pred_region
      _
    $region17: #{_autoencoder_forward_jit.1} parent=1 // pred_fallthru
      _
    // Predicated region
    $region18: #{_autoencoder_forward_jit.1} parent=1 // pred_check
      _
    $region19: #{_autoencoder_forward_jit.1} parent=1 // pred_check_branch
      %31 = sbr.rel (0) target = $region21
    $region20: #{_autoencoder_forward_jit.1} parent=1 // pred_region
      _
    $region21: #{_autoencoder_forward_jit.1} parent=1 // pred_fallthru
      _
    // Predicated region
    $region22: #{_autoencoder_forward_jit.1} parent=1 // pred_check
      _
    $region23: #{_autoencoder_forward_jit.1} parent=1 // pred_check_branch
      %33 = sbr.rel (0) target = $region25
    $region24: #{_autoencoder_forward_jit.1} parent=1 // pred_region
      _
    $region25: #{_autoencoder_forward_jit.1} parent=1 // pred_fallthru
      _
    // Predicated region
    $region26: #{_autoencoder_forward_jit.1} parent=1 // pred_check
      _
    $region27: #{_autoencoder_forward_jit.1} parent=1 // pred_check_branch
      %35 = sbr.rel (0) target = $region29
    $region28: #{_autoencoder_forward_jit.1} parent=1 // pred_region
      _
    $region29: #{_autoencoder_forward_jit.1} parent=1 // pred_fallthru
      _
    // Predicated region
    $region30: #{_autoencoder_forward_jit.1} parent=1 // pred_check
      _
    $region31: #{_autoencoder_forward_jit.1} parent=1 // pred_check_branch
      %37 = sbr.rel (0) target = $region33
    $region32: #{_autoencoder_forward_jit.1} parent=1 // pred_region
      _
    $region33: #{_autoencoder_forward_jit.1} parent=1 // pred_fallthru
      _
    // Predicated region
    $region34: #{_autoencoder_forward_jit.1} parent=1 // pred_check
      _
    $region35: #{_autoencoder_forward_jit.1} parent=1 // pred_check_branch
      %39 = sbr.rel (0) target = $region37
    $region36: #{_autoencoder_forward_jit.1} parent=1 // pred_region
      _
    $region37: #{_autoencoder_forward_jit.1} parent=1 // pred_fallthru
      _
    // Predicated region
    $region38: #{_autoencoder_forward_jit.1} parent=1 // pred_check
      _
    $region39: #{_autoencoder_forward_jit.1} parent=1 // pred_check_branch
      %41 = sbr.rel (0) target = $region41
    $region40: #{_autoencoder_forward_jit.1} parent=1 // pred_region
      _
    $region41: #{_autoencoder_forward_jit.1} parent=1 // pred_fallthru
      _
    // Predicated region
    $region42: #{_autoencoder_forward_jit.1} parent=1 // pred_check
      _
    $region43: #{_autoencoder_forward_jit.1} parent=1 // pred_check_branch
      %43 = sbr.rel (0) target = $region45
    $region44: #{_autoencoder_forward_jit.1} parent=1 // pred_region
      _
    $region45: #{_autoencoder_forward_jit.1} parent=1 // pred_fallthru
      _
    // Predicated region
    $region46: #{_autoencoder_forward_jit.1} parent=1 // pred_check
      _
    $region47: #{_autoencoder_forward_jit.1} parent=1 // pred_check_branch
      %45 = sbr.rel (0) target = $region49
    $region48: #{_autoencoder_forward_jit.1} parent=1 // pred_region
      _
    $region49: #{_autoencoder_forward_jit.1} parent=1 // pred_fallthru
      _
    // Predicated region
    $region50: #{_autoencoder_forward_jit.1} parent=1 // pred_check
      _
    $region51: #{_autoencoder_forward_jit.1} parent=1 // pred_check_branch
      %47 = sbr.rel (0) target = $region53
    $region52: #{_autoencoder_forward_jit.1} parent=1 // pred_region
      _
    $region53: #{_autoencoder_forward_jit.1} parent=1 // pred_fallthru
      _
    %v48 = vld [vmem:[%s0] sm:$0xff]
    %v49 = vld [vmem:[%s0 + $0x8] sm:$0xff]
    %v50 = vld [vmem:[%s0 + $0x10] sm:$0xff]
    %v51 = vld [vmem:[%s0 + $0x18] sm:$0xff]
    %v52 = vld [vmem:[%s1] sm:$0xff]
    %v53 = vld [vmem:[%s1 + $0x8] sm:$0xff]
    %v54 = vld [vmem:[%s1 + $0x10] sm:$0xff]
    %v55 = vld [vmem:[%s1 + $0x18] sm:$0xff]
    %v56 = vld [vmem:[%s1 + $0x20] sm:$0xff]
    %v57 = vld [vmem:[%s1 + $0x28] sm:$0xff]
    %v58 = vld [vmem:[%s1 + $0x30] sm:$0xff]
    %v59 = vld [vmem:[%s1 + $0x38] sm:$0xff]
    %v60 = vld [vmem:[%s1 + $0x40] sm:$0xff]
    %v61 = vld [vmem:[%s1 + $0x48] sm:$0xff]
    %v62 = vld [vmem:[%s1 + $0x50] sm:$0xff]
    %v63 = vld [vmem:[%s1 + $0x58] sm:$0xff]
    %v64 = vld [vmem:[%s1 + $0x60] sm:$0xff]
    %v65 = vld [vmem:[%s1 + $0x68] sm:$0xff]
    %v66 = vld [vmem:[%s1 + $0x70] sm:$0xff]
    %v67 = vld [vmem:[%s1 + $0x78] sm:$0xff]
    %v68 = vld [vmem:[%s1 + $0x80] sm:$0xff]
    %v69 = vld [vmem:[%s1 + $0x88] sm:$0xff]
    %v70 = vld [vmem:[%s1 + $0x90] sm:$0xff]
    %v71 = vld [vmem:[%s1 + $0x98] sm:$0xff]
    %v72 = vld [vmem:[%s1 + $0xa0] sm:$0xff]
    %v73 = vld [vmem:[%s1 + $0xa8] sm:$0xff]
    %v74 = vld [vmem:[%s1 + $0xb0] sm:$0xff]
    %v75 = vld [vmem:[%s1 + $0xb8] sm:$0xff]
    %v76 = vld [vmem:[%s1 + $0xc0] sm:$0xff]
    %v77 = vld [vmem:[%s1 + $0xc8] sm:$0xff]
    %v78 = vld [vmem:[%s1 + $0xd0] sm:$0xff]
    %v79 = vld [vmem:[%s1 + $0xd8] sm:$0xff]
    %v80 = vld [vmem:[%s1 + $0xe0] sm:$0xff]
    %v81 = vld [vmem:[%s1 + $0xe8] sm:$0xff]
    %v82 = vld [vmem:[%s1 + $0xf0] sm:$0xff]
    %v83 = vld [vmem:[%s1 + $0xf8] sm:$0xff]
    %v84 = vld [vmem:[%s1 + $0x100] sm:$0xff]
    %v85 = vld [vmem:[%s1 + $0x108] sm:$0xff]
    %v86 = vld [vmem:[%s1 + $0x110] sm:$0xff]
    %v87 = vld [vmem:[%s1 + $0x118] sm:$0xff]
    %v88 = vld [vmem:[%s1 + $0x120] sm:$0xff]
    %v89 = vld [vmem:[%s1 + $0x128] sm:$0xff]
    %v90 = vld [vmem:[%s1 + $0x130] sm:$0xff]
    %v91 = vld [vmem:[%s1 + $0x138] sm:$0xff]
    %v92 = vld [vmem:[%s1 + $0x140] sm:$0xff]
    %v93 = vld [vmem:[%s1 + $0x148] sm:$0xff]
    %v94 = vld [vmem:[%s1 + $0x150] sm:$0xff]
    %v95 = vld [vmem:[%s1 + $0x158] sm:$0xff]
    %v96 = vld [vmem:[%s1 + $0x160] sm:$0xff]
    %v97 = vld [vmem:[%s1 + $0x168] sm:$0xff]
    %v98 = vld [vmem:[%s1 + $0x170] sm:$0xff]
    %v99 = vld [vmem:[%s1 + $0x178] sm:$0xff]
    %v100 = vld [vmem:[%s1 + $0x180] sm:$0xff]
    %v101 = vld [vmem:[%s1 + $0x188] sm:$0xff]
    %v102 = vld [vmem:[%s1 + $0x190] sm:$0xff]
    %v103 = vld [vmem:[%s1 + $0x198] sm:$0xff]
    %v104 = vld [vmem:[%s1 + $0x1a0] sm:$0xff]
    %v105 = vld [vmem:[%s1 + $0x1a8] sm:$0xff]
    %v106 = vld [vmem:[%s1 + $0x1b0] sm:$0xff]
    %v107 = vld [vmem:[%s1 + $0x1b8] sm:$0xff]
    %v108 = vld [vmem:[%s1 + $0x1c0] sm:$0xff]
    %v109 = vld [vmem:[%s1 + $0x1c8] sm:$0xff]
    %v110 = vld [vmem:[%s1 + $0x1d0] sm:$0xff]
    %v111 = vld [vmem:[%s1 + $0x1d8] sm:$0xff]
    %v112 = vld [vmem:[%s1 + $0x1e0] sm:$0xff]
    %v113 = vld [vmem:[%s1 + $0x1e8] sm:$0xff]
    %v114 = vld [vmem:[%s1 + $0x1f0] sm:$0xff]
    %v115 = vld [vmem:[%s1 + $0x1f8] sm:$0xff]
    %v116 = vld [vmem:[%s1 + $0x200] sm:$0xff]
    %v117 = vld [vmem:[%s1 + $0x208] sm:$0xff]
    %v118 = vld [vmem:[%s1 + $0x210] sm:$0xff]
    %v119 = vld [vmem:[%s1 + $0x218] sm:$0xff]
    %v120 = vld [vmem:[%s1 + $0x220] sm:$0xff]
    %v121 = vld [vmem:[%s1 + $0x228] sm:$0xff]
    %v122 = vld [vmem:[%s1 + $0x230] sm:$0xff]
    %v123 = vld [vmem:[%s1 + $0x238] sm:$0xff]
    %v124 = vld [vmem:[%s1 + $0x240] sm:$0xff]
    %v125 = vld [vmem:[%s1 + $0x248] sm:$0xff]
    %v126 = vld [vmem:[%s1 + $0x250] sm:$0xff]
    %v127 = vld [vmem:[%s1 + $0x258] sm:$0xff]
    %v128 = vld [vmem:[%s1 + $0x260] sm:$0xff]
    %v129 = vld [vmem:[%s1 + $0x268] sm:$0xff]
    %v130 = vld [vmem:[%s1 + $0x270] sm:$0xff]
    %v131 = vld [vmem:[%s1 + $0x278] sm:$0xff]
    %v132 = vld [vmem:[%s1 + $0x280] sm:$0xff]
    %v133 = vld [vmem:[%s1 + $0x288] sm:$0xff]
    %v134 = vld [vmem:[%s1 + $0x290] sm:$0xff]
    %v135 = vld [vmem:[%s1 + $0x298] sm:$0xff]
    %v136 = vld [vmem:[%s1 + $0x2a0] sm:$0xff]
    %v137 = vld [vmem:[%s1 + $0x2a8] sm:$0xff]
    %v138 = vld [vmem:[%s1 + $0x2b0] sm:$0xff]
    %v139 = vld [vmem:[%s1 + $0x2b8] sm:$0xff]
    %v140 = vld [vmem:[%s1 + $0x2c0] sm:$0xff]
    %v141 = vld [vmem:[%s1 + $0x2c8] sm:$0xff]
    %v142 = vld [vmem:[%s1 + $0x2d0] sm:$0xff]
    %v143 = vld [vmem:[%s1 + $0x2d8] sm:$0xff]
    %v144 = vld [vmem:[%s1 + $0x2e0] sm:$0xff]
    %v145 = vld [vmem:[%s1 + $0x2e8] sm:$0xff]
    %v146 = vld [vmem:[%s1 + $0x2f0] sm:$0xff]
    %v147 = vld [vmem:[%s1 + $0x2f8] sm:$0xff]
    %v148 = vld [vmem:[%s1 + $0x300] sm:$0xff]
    %v149 = vld [vmem:[%s1 + $0x308] sm:$0xff]
    %v150 = vld [vmem:[%s1 + $0x310] sm:$0xff]
    %v151 = vld [vmem:[%s1 + $0x318] sm:$0xff]
    %v152 = vld [vmem:[%s2] sm:$0x3]
    %v154 = vlaneseq
    %v155 = vshrl.u32 %v154, 7
    %v156 = vsub.s32 0, %v155
    %v157 = vrot.slane %v152, %v156
    %v158 = vlaneseq
    %v159 = vshrl.u32 %v158, 7
    %v160 = vsub.s32 1, %v159
    %v161 = vrot.slane %v152, %v160
    %vm164 = vcmask 130048
    %v166 = vsel %vm164, %v51, 0
    %168 = vmatprep.subr.mxu0 %v83
    %169 = vmatpush1.msra.mxu0 %v82
    %170 = vmatprep.subr.mxu0 %v81
    %171 = vmatpush1.msra.mxu0 %v80
    %172 = vmatprep.subr.mxu0 %v79
    %173 = vmatpush1.msra.mxu0 %v78
    %174 = vmatprep.subr.mxu0 %v77
    %175 = vmatpush1.msra.mxu0 %v76
    %176 = vmatprep.subr.mxu0 %v75
    %177 = vmatpush1.msra.mxu0 %v74
    %178 = vmatprep.subr.mxu0 %v73
    %179 = vmatpush1.msra.mxu0 %v72
    %180 = vmatprep.subr.mxu0 %v71
    %181 = vmatpush1.msra.mxu0 %v70
    %182 = vmatprep.subr.mxu0 %v69
    %183 = vmatpush1.msra.mxu0 %v68
    %184 = vmatprep.subr.mxu0 %v67
    %185 = vmatpush1.msra.mxu0 %v66
    %186 = vmatprep.subr.mxu0 %v65
    %187 = vmatpush1.msra.mxu0 %v64
    %188 = vmatprep.subr.mxu0 %v63
    %189 = vmatpush1.msra.mxu0 %v62
    %190 = vmatprep.subr.mxu0 %v61
    %191 = vmatpush1.msra.mxu0 %v60
    %192 = vmatprep.subr.mxu0 %v59
    %193 = vmatpush1.msra.mxu0 %v58
    %194 = vmatprep.subr.mxu0 %v57
    %195 = vmatpush1.msra.mxu0 %v56
    %196 = vmatprep.subr.mxu0 %v55
    %197 = vmatpush1.msra.mxu0 %v54
    %198 = vmatprep.subr.mxu0 %v53
    %199 = vmatpush1.msra.mxu0 %v52
    %200 = vmatprep.subr.mxu0 %v115
    %201 = vmatpush2.msra.mxu0 %v114
    %202 = vmatprep.subr.mxu0 %v113
    %203 = vmatpush2.msra.mxu0 %v112
    %204 = vmatprep.subr.mxu0 %v111
    %205 = vmatpush2.msra.mxu0 %v110
    %206 = vmatprep.subr.mxu0 %v109
    %207 = vmatpush2.msra.mxu0 %v108
    %208 = vmatprep.subr.mxu0 %v107
    %209 = vmatpush2.msra.mxu0 %v106
    %210 = vmatprep.subr.mxu0 %v105
    %211 = vmatpush2.msra.mxu0 %v104
    %212 = vmatprep.subr.mxu0 %v103
    %213 = vmatpush2.msra.mxu0 %v102
    %214 = vmatprep.subr.mxu0 %v101
    %215 = vmatpush2.msra.mxu0 %v100
    %216 = vmatprep.subr.mxu0 %v99
    %217 = vmatpush2.msra.mxu0 %v98
    %218 = vmatprep.subr.mxu0 %v97
    %219 = vmatpush2.msra.mxu0 %v96
    %220 = vmatprep.subr.mxu0 %v95
    %221 = vmatpush2.msra.mxu0 %v94
    %222 = vmatprep.subr.mxu0 %v93
    %223 = vmatpush2.msra.mxu0 %v92
    %224 = vmatprep.subr.mxu0 %v91
    %225 = vmatpush2.msra.mxu0 %v90
    %226 = vmatprep.subr.mxu0 %v89
    %227 = vmatpush2.msra.mxu0 %v88
    %228 = vmatprep.subr.mxu0 %v87
    %229 = vmatpush2.msra.mxu0 %v86
    %230 = vmatprep.subr.mxu0 %v85
    %231 = vmatpush2.msra.mxu0 %v84
    %232 = vmatprep.mubr.f32.mxu0 %v49
    %233 = vmatmul.mubr.f32.gmra.mxu0 %v48
    %v234 = vpop.f32.mrf.mxu0
    %v235 = vadd.f32 %v157, %v234
    %v236 = vpop.f32.mrf.mxu0
    %v237 = vadd.f32 %v161, %v236
    %238 = vdwg.mxu0
    %239 = vmatprep.subr.mxu0 %v147
    %240 = vmatpush1.msra.mxu0 %v146
    %241 = vmatprep.subr.mxu0 %v145
    %242 = vmatpush1.msra.mxu0 %v144
    %243 = vmatprep.subr.mxu0 %v143
    %244 = vmatpush1.msra.mxu0 %v142
    %245 = vmatprep.subr.mxu0 %v141
    %246 = vmatpush1.msra.mxu0 %v140
    %247 = vmatprep.subr.mxu0 %v139
    %248 = vmatpush1.msra.mxu0 %v138
    %249 = vmatprep.subr.mxu0 %v137
    %250 = vmatpush1.msra.mxu0 %v136
    %251 = vmatprep.subr.mxu0 %v135
    %252 = vmatpush1.msra.mxu0 %v134
    %253 = vmatprep.subr.mxu0 %v133
    %254 = vmatpush1.msra.mxu0 %v132
    %255 = vmatprep.subr.mxu0 %v131
    %256 = vmatpush1.msra.mxu0 %v130
    %257 = vmatprep.subr.mxu0 %v129
    %258 = vmatpush1.msra.mxu0 %v128
    %259 = vmatprep.subr.mxu0 %v127
    %260 = vmatpush1.msra.mxu0 %v126
    %261 = vmatprep.subr.mxu0 %v125
    %262 = vmatpush1.msra.mxu0 %v124
    %263 = vmatprep.subr.mxu0 %v123
    %264 = vmatpush1.msra.mxu0 %v122
    %265 = vmatprep.subr.mxu0 %v121
    %266 = vmatpush1.msra.mxu0 %v120
    %267 = vmatprep.subr.mxu0 %v119
    %268 = vmatpush1.msra.mxu0 %v118
    %269 = vmatprep.subr.mxu0 %v117
    %270 = vmatpush1.msra.mxu0 %v116
    %271 = vmatprep.subr.mxu0 0.0
    %272 = vmatpush2.msra.mxu0 0.0
    %273 = vmatprep.subr.mxu0 0.0
    %274 = vmatpush2.msra.mxu0 0.0
    %275 = vmatprep.subr.mxu0 0.0
    %276 = vmatpush2.msra.mxu0 0.0
    %277 = vmatprep.subr.mxu0 0.0
    %278 = vmatpush2.msra.mxu0 0.0
    %279 = vmatprep.subr.mxu0 0.0
    %280 = vmatpush2.msra.mxu0 0.0
    %281 = vmatprep.subr.mxu0 0.0
    %282 = vmatpush2.msra.mxu0 0.0
    %283 = vmatprep.subr.mxu0 0.0
    %284 = vmatpush2.msra.mxu0 0.0
    %285 = vmatprep.subr.mxu0 0.0
    %286 = vmatpush2.msra.mxu0 0.0
    %287 = vmatprep.subr.mxu0 0.0
    %288 = vmatpush2.msra.mxu0 0.0
    %289 = vmatprep.subr.mxu0 0.0
    %290 = vmatpush2.msra.mxu0 0.0
    %291 = vmatprep.subr.mxu0 0.0
    %292 = vmatpush2.msra.mxu0 0.0
    %293 = vmatprep.subr.mxu0 0.0
    %294 = vmatpush2.msra.mxu0 0.0
    %295 = vmatprep.subr.mxu0 0.0
    %296 = vmatpush2.msra.mxu0 0.0
    %297 = vmatprep.subr.mxu0 0.0
    %298 = vmatpush2.msra.mxu0 0.0
    %299 = vmatprep.subr.mxu0 %v151
    %300 = vmatpush2.msra.mxu0 %v150
    %301 = vmatprep.subr.mxu0 %v149
    %302 = vmatpush2.msra.mxu0 %v148
    %303 = vmatprep.mubr.f32.mxu0 %v166
    %304 = vmatmul.mubr.f32.gmra.mxu0 %v50
    %v305 = vpop.f32.mrf.mxu0
    %v306 = vadd.f32 %v235, %v305
    %v307 = vpop.f32.mrf.mxu0
    %v308 = vadd.f32 %v237, %v307
    %309 = vdwg.mxu0
    %v310 = vtanh.pop %v306
    %v311 = vtanh.pop %v308
    %v312 = vld [vmem:[%s3] sm:$0xff]
    %v313 = vld [vmem:[%s3 + $0x8] sm:$0xff]
    %v314 = vld [vmem:[%s3 + $0x10] sm:$0xff]
    %v315 = vld [vmem:[%s3 + $0x18] sm:$0xff]
    %v316 = vld [vmem:[%s3 + $0x20] sm:$0xff]
    %v317 = vld [vmem:[%s3 + $0x28] sm:$0xff]
    %v318 = vld [vmem:[%s3 + $0x30] sm:$0xff]
    %v319 = vld [vmem:[%s3 + $0x38] sm:$0xff]
    %v320 = vld [vmem:[%s3 + $0x40] sm:$0xff]
    %v321 = vld [vmem:[%s3 + $0x48] sm:$0xff]
    %v322 = vld [vmem:[%s3 + $0x50] sm:$0xff]
    %v323 = vld [vmem:[%s3 + $0x58] sm:$0xff]
    %v324 = vld [vmem:[%s3 + $0x60] sm:$0xff]
    %v325 = vld [vmem:[%s3 + $0x68] sm:$0xff]
    %v326 = vld [vmem:[%s3 + $0x70] sm:$0xff]
    %v327 = vld [vmem:[%s3 + $0x78] sm:$0xff]
    %v328 = vld [vmem:[%s3 + $0x80] sm:$0xff]
    %v329 = vld [vmem:[%s3 + $0x88] sm:$0xff]
    %v330 = vld [vmem:[%s3 + $0x90] sm:$0xff]
    %v331 = vld [vmem:[%s3 + $0x98] sm:$0xff]
    %v332 = vld [vmem:[%s3 + $0xa0] sm:$0xff]
    %v333 = vld [vmem:[%s3 + $0xa8] sm:$0xff]
    %v334 = vld [vmem:[%s3 + $0xb0] sm:$0xff]
    %v335 = vld [vmem:[%s3 + $0xb8] sm:$0xff]
    %v336 = vld [vmem:[%s3 + $0xc0] sm:$0xff]
    %v337 = vld [vmem:[%s3 + $0xc8] sm:$0xff]
    %v338 = vld [vmem:[%s3 + $0xd0] sm:$0xff]
    %v339 = vld [vmem:[%s3 + $0xd8] sm:$0xff]
    %v340 = vld [vmem:[%s3 + $0xe0] sm:$0xff]
    %v341 = vld [vmem:[%s3 + $0xe8] sm:$0xff]
    %v342 = vld [vmem:[%s3 + $0xf0] sm:$0xff]
    %v343 = vld [vmem:[%s3 + $0xf8] sm:$0xff]
    %v344 = vld [vmem:[%s4] sm:$0x1]
    %v346 = vlaneseq
    %v347 = vshrl.u32 %v346, 7
    %v348 = vsub.s32 0, %v347
    %v349 = vrot.slane %v344, %v348
    %351 = vmatprep.subr.mxu0 0.0
    %352 = vmatpush1.msra.mxu0 %v327
    %353 = vmatprep.subr.mxu0 0.0
    %354 = vmatpush1.msra.mxu0 %v326
    %355 = vmatprep.subr.mxu0 0.0
    %356 = vmatpush1.msra.mxu0 %v325
    %357 = vmatprep.subr.mxu0 0.0
    %358 = vmatpush1.msra.mxu0 %v324
    %359 = vmatprep.subr.mxu0 0.0
    %360 = vmatpush1.msra.mxu0 %v323
    %361 = vmatprep.subr.mxu0 0.0
    %362 = vmatpush1.msra.mxu0 %v322
    %363 = vmatprep.subr.mxu0 0.0
    %364 = vmatpush1.msra.mxu0 %v321
    %365 = vmatprep.subr.mxu0 0.0
    %366 = vmatpush1.msra.mxu0 %v320
    %367 = vmatprep.subr.mxu0 0.0
    %368 = vmatpush1.msra.mxu0 %v319
    %369 = vmatprep.subr.mxu0 0.0
    %370 = vmatpush1.msra.mxu0 %v318
    %371 = vmatprep.subr.mxu0 0.0
    %372 = vmatpush1.msra.mxu0 %v317
    %373 = vmatprep.subr.mxu0 0.0
    %374 = vmatpush1.msra.mxu0 %v316
    %375 = vmatprep.subr.mxu0 0.0
    %376 = vmatpush1.msra.mxu0 %v315
    %377 = vmatprep.subr.mxu0 0.0
    %378 = vmatpush1.msra.mxu0 %v314
    %379 = vmatprep.subr.mxu0 0.0
    %380 = vmatpush1.msra.mxu0 %v313
    %381 = vmatprep.subr.mxu0 0.0
    %382 = vmatpush1.msra.mxu0 %v312
    %383 = vmatprep.subr.mxu0 0.0
    %384 = vmatpush2.msra.mxu0 %v343
    %385 = vmatprep.subr.mxu0 0.0
    %386 = vmatpush2.msra.mxu0 %v342
    %387 = vmatprep.subr.mxu0 0.0
    %388 = vmatpush2.msra.mxu0 %v341
    %389 = vmatprep.subr.mxu0 0.0
    %390 = vmatpush2.msra.mxu0 %v340
    %391 = vmatprep.subr.mxu0 0.0
    %392 = vmatpush2.msra.mxu0 %v339
    %393 = vmatprep.subr.mxu0 0.0
    %394 = vmatpush2.msra.mxu0 %v338
    %395 = vmatprep.subr.mxu0 0.0
    %396 = vmatpush2.msra.mxu0 %v337
    %397 = vmatprep.subr.mxu0 0.0
    %398 = vmatpush2.msra.mxu0 %v336
    %399 = vmatprep.subr.mxu0 0.0
    %400 = vmatpush2.msra.mxu0 %v335
    %401 = vmatprep.subr.mxu0 0.0
    %402 = vmatpush2.msra.mxu0 %v334
    %403 = vmatprep.subr.mxu0 0.0
    %404 = vmatpush2.msra.mxu0 %v333
    %405 = vmatprep.subr.mxu0 0.0
    %406 = vmatpush2.msra.mxu0 %v332
    %407 = vmatprep.subr.mxu0 0.0
    %408 = vmatpush2.msra.mxu0 %v331
    %409 = vmatprep.subr.mxu0 0.0
    %410 = vmatpush2.msra.mxu0 %v330
    %411 = vmatprep.subr.mxu0 0.0
    %412 = vmatpush2.msra.mxu0 %v329
    %413 = vmatprep.subr.mxu0 0.0
    %414 = vmatpush2.msra.mxu0 %v328
    %415 = vmatprep.mubr.f32.mxu0 %v311
    %416 = vmatmul.mubr.f32.gmra.mxu0 %v310
    %v417 = vpop.f32.mrf.mxu0
    %v418 = vadd.f32 %v349, %v417
    %v419 = vpop.f32.mrf.mxu0
    %420 = vdwg.mxu0
    %v421 = vtanh.pop %v418
    %v422 = vld [vmem:[%s5] sm:$0xff]
    %v423 = vld [vmem:[%s5 + $0x8] sm:$0xff]
    %v424 = vld [vmem:[%s5 + $0x10] sm:$0xff]
    %v425 = vld [vmem:[%s5 + $0x18] sm:$0xff]
    %v426 = vld [vmem:[%s5 + $0x20] sm:$0xff]
    %v427 = vld [vmem:[%s5 + $0x28] sm:$0xff]
    %v428 = vld [vmem:[%s5 + $0x30] sm:$0xff]
    %v429 = vld [vmem:[%s5 + $0x38] sm:$0xff]
    %v430 = vld [vmem:[%s5 + $0x40] sm:$0xff]
    %v431 = vld [vmem:[%s5 + $0x48] sm:$0xff]
    %v432 = vld [vmem:[%s5 + $0x50] sm:$0xff]
    %v433 = vld [vmem:[%s5 + $0x58] sm:$0xff]
    %v434 = vld [vmem:[%s5 + $0x60] sm:$0xff]
    %v435 = vld [vmem:[%s5 + $0x68] sm:$0xff]
    %v436 = vld [vmem:[%s5 + $0x70] sm:$0xff]
    %v437 = vld [vmem:[%s5 + $0x78] sm:$0xff]
    %v438 = vld [vmem:[%s6] sm:$0x1]
    %v440 = vlaneseq
    %v441 = vshrl.u32 %v440, 7
    %v442 = vsub.s32 0, %v441
    %v443 = vrot.slane %v438, %v442
    %445 = vmatprep.subr.mxu0 0.0
    %446 = vmatpush1.msra.mxu0 %v437
    %447 = vmatprep.subr.mxu0 0.0
    %448 = vmatpush1.msra.mxu0 %v436
    %449 = vmatprep.subr.mxu0 0.0
    %450 = vmatpush1.msra.mxu0 %v435
    %451 = vmatprep.subr.mxu0 0.0
    %452 = vmatpush1.msra.mxu0 %v434
    %453 = vmatprep.subr.mxu0 0.0
    %454 = vmatpush1.msra.mxu0 %v433
    %455 = vmatprep.subr.mxu0 0.0
    %456 = vmatpush1.msra.mxu0 %v432
    %457 = vmatprep.subr.mxu0 0.0
    %458 = vmatpush1.msra.mxu0 %v431
    %459 = vmatprep.subr.mxu0 0.0
    %460 = vmatpush1.msra.mxu0 %v430
    %461 = vmatprep.subr.mxu0 0.0
    %462 = vmatpush1.msra.mxu0 %v429
    %463 = vmatprep.subr.mxu0 0.0
    %464 = vmatpush1.msra.mxu0 %v428
    %465 = vmatprep.subr.mxu0 0.0
    %466 = vmatpush1.msra.mxu0 %v427
    %467 = vmatprep.subr.mxu0 0.0
    %468 = vmatpush1.msra.mxu0 %v426
    %469 = vmatprep.subr.mxu0 0.0
    %470 = vmatpush1.msra.mxu0 %v425
    %471 = vmatprep.subr.mxu0 0.0
    %472 = vmatpush1.msra.mxu0 %v424
    %473 = vmatprep.subr.mxu0 0.0
    %474 = vmatpush1.msra.mxu0 %v423
    %475 = vmatprep.subr.mxu0 0.0
    %476 = vmatpush1.msra.mxu0 %v422
    %477 = vmatprep.subr.mxu0 0.0
    %478 = vmatpush2.msra.mxu0 0.0
    %479 = vmatprep.subr.mxu0 0.0
    %480 = vmatpush2.msra.mxu0 0.0
    %481 = vmatprep.subr.mxu0 0.0
    %482 = vmatpush2.msra.mxu0 0.0
    %483 = vmatprep.subr.mxu0 0.0
    %484 = vmatpush2.msra.mxu0 0.0
    %485 = vmatprep.subr.mxu0 0.0
    %486 = vmatpush2.msra.mxu0 0.0
    %487 = vmatprep.subr.mxu0 0.0
    %488 = vmatpush2.msra.mxu0 0.0
    %489 = vmatprep.subr.mxu0 0.0
    %490 = vmatpush2.msra.mxu0 0.0
    %491 = vmatprep.subr.mxu0 0.0
    %492 = vmatpush2.msra.mxu0 0.0
    %493 = vmatprep.subr.mxu0 0.0
    %494 = vmatpush2.msra.mxu0 0.0
    %495 = vmatprep.subr.mxu0 0.0
    %496 = vmatpush2.msra.mxu0 0.0
    %497 = vmatprep.subr.mxu0 0.0
    %498 = vmatpush2.msra.mxu0 0.0
    %499 = vmatprep.subr.mxu0 0.0
    %500 = vmatpush2.msra.mxu0 0.0
    %501 = vmatprep.subr.mxu0 0.0
    %502 = vmatpush2.msra.mxu0 0.0
    %503 = vmatprep.subr.mxu0 0.0
    %504 = vmatpush2.msra.mxu0 0.0
    %505 = vmatprep.subr.mxu0 0.0
    %506 = vmatpush2.msra.mxu0 0.0
    %507 = vmatprep.subr.mxu0 0.0
    %508 = vmatpush2.msra.mxu0 0.0
    %509 = vmatprep.mubr.f32.mxu0 0.0
    %510 = vmatmul.mubr.f32.gmra.mxu0 %v421
    %v511 = vpop.f32.mrf.mxu0
    %v512 = vadd.f32 %v443, %v511
    %v513 = vpop.f32.mrf.mxu0
    %514 = vdwg.mxu0
    %v515 = vld [vmem:[%s7] sm:$0xff]
    %v516 = vld [vmem:[%s7 + $0x8] sm:$0xff]
    %v517 = vld [vmem:[%s7 + $0x10] sm:$0xff]
    %v518 = vld [vmem:[%s7 + $0x18] sm:$0xff]
    %v519 = vld [vmem:[%s7 + $0x20] sm:$0xff]
    %v520 = vld [vmem:[%s7 + $0x28] sm:$0xff]
    %v521 = vld [vmem:[%s7 + $0x30] sm:$0xff]
    %v522 = vld [vmem:[%s7 + $0x38] sm:$0xff]
    %v523 = vld [vmem:[%s7 + $0x40] sm:$0xff]
    %v524 = vld [vmem:[%s7 + $0x48] sm:$0xff]
    %v525 = vld [vmem:[%s7 + $0x50] sm:$0xff]
    %v526 = vld [vmem:[%s7 + $0x58] sm:$0xff]
    %v527 = vld [vmem:[%s7 + $0x60] sm:$0xff]
    %v528 = vld [vmem:[%s7 + $0x68] sm:$0xff]
    %v529 = vld [vmem:[%s7 + $0x70] sm:$0xff]
    %v530 = vld [vmem:[%s7 + $0x78] sm:$0xff]
    %v531 = vld [vmem:[%s8] sm:$0x1]
    %v533 = vlaneseq
    %v534 = vshrl.u32 %v533, 7
    %v535 = vsub.s32 0, %v534
    %v536 = vrot.slane %v531, %v535
    %538 = vmatprep.subr.mxu0 0.0
    %539 = vmatpush1.msra.mxu0 %v530
    %540 = vmatprep.subr.mxu0 0.0
    %541 = vmatpush1.msra.mxu0 %v529
    %542 = vmatprep.subr.mxu0 0.0
    %543 = vmatpush1.msra.mxu0 %v528
    %544 = vmatprep.subr.mxu0 0.0
    %545 = vmatpush1.msra.mxu0 %v527
    %546 = vmatprep.subr.mxu0 0.0
    %547 = vmatpush1.msra.mxu0 %v526
    %548 = vmatprep.subr.mxu0 0.0
    %549 = vmatpush1.msra.mxu0 %v525
    %550 = vmatprep.subr.mxu0 0.0
    %551 = vmatpush1.msra.mxu0 %v524
    %552 = vmatprep.subr.mxu0 0.0
    %553 = vmatpush1.msra.mxu0 %v523
    %554 = vmatprep.subr.mxu0 0.0
    %555 = vmatpush1.msra.mxu0 %v522
    %556 = vmatprep.subr.mxu0 0.0
    %557 = vmatpush1.msra.mxu0 %v521
    %558 = vmatprep.subr.mxu0 0.0
    %559 = vmatpush1.msra.mxu0 %v520
    %560 = vmatprep.subr.mxu0 0.0
    %561 = vmatpush1.msra.mxu0 %v519
    %562 = vmatprep.subr.mxu0 0.0
    %563 = vmatpush1.msra.mxu0 %v518
    %564 = vmatprep.subr.mxu0 0.0
    %565 = vmatpush1.msra.mxu0 %v517
    %566 = vmatprep.subr.mxu0 0.0
    %567 = vmatpush1.msra.mxu0 %v516
    %568 = vmatprep.subr.mxu0 0.0
    %569 = vmatpush1.msra.mxu0 %v515
    %570 = vmatprep.subr.mxu0 0.0
    %571 = vmatpush2.msra.mxu0 0.0
    %572 = vmatprep.subr.mxu0 0.0
    %573 = vmatpush2.msra.mxu0 0.0
    %574 = vmatprep.subr.mxu0 0.0
    %575 = vmatpush2.msra.mxu0 0.0
    %576 = vmatprep.subr.mxu0 0.0
    %577 = vmatpush2.msra.mxu0 0.0
    %578 = vmatprep.subr.mxu0 0.0
    %579 = vmatpush2.msra.mxu0 0.0
    %580 = vmatprep.subr.mxu0 0.0
    %581 = vmatpush2.msra.mxu0 0.0
    %582 = vmatprep.subr.mxu0 0.0
    %583 = vmatpush2.msra.mxu0 0.0
    %584 = vmatprep.subr.mxu0 0.0
    %585 = vmatpush2.msra.mxu0 0.0
    %586 = vmatprep.subr.mxu0 0.0
    %587 = vmatpush2.msra.mxu0 0.0
    %588 = vmatprep.subr.mxu0 0.0
    %589 = vmatpush2.msra.mxu0 0.0
    %590 = vmatprep.subr.mxu0 0.0
    %591 = vmatpush2.msra.mxu0 0.0
    %592 = vmatprep.subr.mxu0 0.0
    %593 = vmatpush2.msra.mxu0 0.0
    %594 = vmatprep.subr.mxu0 0.0
    %595 = vmatpush2.msra.mxu0 0.0
    %596 = vmatprep.subr.mxu0 0.0
    %597 = vmatpush2.msra.mxu0 0.0
    %598 = vmatprep.subr.mxu0 0.0
    %599 = vmatpush2.msra.mxu0 0.0
    %600 = vmatprep.subr.mxu0 0.0
    %601 = vmatpush2.msra.mxu0 0.0
    %602 = vmatprep.mubr.f32.mxu0 0.0
    %603 = vmatmul.mubr.f32.gmra.mxu0 %v512
    %v604 = vpop.f32.mrf.mxu0
    %v605 = vadd.f32 %v536, %v604
    %v606 = vpop.f32.mrf.mxu0
    %607 = vdwg.mxu0
    %v608 = vtanh.pop %v605
    %v609 = vld [vmem:[%s9] sm:$0xff]
    %v610 = vld [vmem:[%s9 + $0x8] sm:$0xff]
    %v611 = vld [vmem:[%s9 + $0x10] sm:$0xff]
    %v612 = vld [vmem:[%s9 + $0x18] sm:$0xff]
    %v613 = vld [vmem:[%s9 + $0x20] sm:$0xff]
    %v614 = vld [vmem:[%s9 + $0x28] sm:$0xff]
    %v615 = vld [vmem:[%s9 + $0x30] sm:$0xff]
    %v616 = vld [vmem:[%s9 + $0x38] sm:$0xff]
    %v617 = vld [vmem:[%s9 + $0x40] sm:$0xff]
    %v618 = vld [vmem:[%s9 + $0x48] sm:$0xff]
    %v619 = vld [vmem:[%s9 + $0x50] sm:$0xff]
    %v620 = vld [vmem:[%s9 + $0x58] sm:$0xff]
    %v621 = vld [vmem:[%s9 + $0x60] sm:$0xff]
    %v622 = vld [vmem:[%s9 + $0x68] sm:$0xff]
    %v623 = vld [vmem:[%s9 + $0x70] sm:$0xff]
    %v624 = vld [vmem:[%s9 + $0x78] sm:$0xff]
    %v625 = vld [vmem:[%s9 + $0x80] sm:$0xff]
    %v626 = vld [vmem:[%s9 + $0x88] sm:$0xff]
    %v627 = vld [vmem:[%s9 + $0x90] sm:$0xff]
    %v628 = vld [vmem:[%s9 + $0x98] sm:$0xff]
    %v629 = vld [vmem:[%s9 + $0xa0] sm:$0xff]
    %v630 = vld [vmem:[%s9 + $0xa8] sm:$0xff]
    %v631 = vld [vmem:[%s9 + $0xb0] sm:$0xff]
    %v632 = vld [vmem:[%s9 + $0xb8] sm:$0xff]
    %v633 = vld [vmem:[%s9 + $0xc0] sm:$0xff]
    %v634 = vld [vmem:[%s9 + $0xc8] sm:$0xff]
    %v635 = vld [vmem:[%s9 + $0xd0] sm:$0xff]
    %v636 = vld [vmem:[%s9 + $0xd8] sm:$0xff]
    %v637 = vld [vmem:[%s9 + $0xe0] sm:$0xff]
    %v638 = vld [vmem:[%s9 + $0xe8] sm:$0xff]
    %v639 = vld [vmem:[%s9 + $0xf0] sm:$0xff]
    %v640 = vld [vmem:[%s9 + $0xf8] sm:$0xff]
    %v641 = vld [vmem:[%s10] sm:$0x3]
    %v643 = vlaneseq
    %v644 = vshrl.u32 %v643, 7
    %v645 = vsub.s32 0, %v644
    %v646 = vrot.slane %v641, %v645
    %v647 = vlaneseq
    %v648 = vshrl.u32 %v647, 7
    %v649 = vsub.s32 1, %v648
    %v650 = vrot.slane %v641, %v649
    %653 = vmatprep.subr.mxu0 %v640
    %654 = vmatpush1.msra.mxu0 %v639
    %655 = vmatprep.subr.mxu0 %v638
    %656 = vmatpush1.msra.mxu0 %v637
    %657 = vmatprep.subr.mxu0 %v636
    %658 = vmatpush1.msra.mxu0 %v635
    %659 = vmatprep.subr.mxu0 %v634
    %660 = vmatpush1.msra.mxu0 %v633
    %661 = vmatprep.subr.mxu0 %v632
    %662 = vmatpush1.msra.mxu0 %v631
    %663 = vmatprep.subr.mxu0 %v630
    %664 = vmatpush1.msra.mxu0 %v629
    %665 = vmatprep.subr.mxu0 %v628
    %666 = vmatpush1.msra.mxu0 %v627
    %667 = vmatprep.subr.mxu0 %v626
    %668 = vmatpush1.msra.mxu0 %v625
    %669 = vmatprep.subr.mxu0 %v624
    %670 = vmatpush1.msra.mxu0 %v623
    %671 = vmatprep.subr.mxu0 %v622
    %672 = vmatpush1.msra.mxu0 %v621
    %673 = vmatprep.subr.mxu0 %v620
    %674 = vmatpush1.msra.mxu0 %v619
    %675 = vmatprep.subr.mxu0 %v618
    %676 = vmatpush1.msra.mxu0 %v617
    %677 = vmatprep.subr.mxu0 %v616
    %678 = vmatpush1.msra.mxu0 %v615
    %679 = vmatprep.subr.mxu0 %v614
    %680 = vmatpush1.msra.mxu0 %v613
    %681 = vmatprep.subr.mxu0 %v612
    %682 = vmatpush1.msra.mxu0 %v611
    %683 = vmatprep.subr.mxu0 %v610
    %684 = vmatpush1.msra.mxu0 %v609
    %685 = vmatprep.subr.mxu0 0.0
    %686 = vmatpush2.msra.mxu0 0.0
    %687 = vmatprep.subr.mxu0 0.0
    %688 = vmatpush2.msra.mxu0 0.0
    %689 = vmatprep.subr.mxu0 0.0
    %690 = vmatpush2.msra.mxu0 0.0
    %691 = vmatprep.subr.mxu0 0.0
    %692 = vmatpush2.msra.mxu0 0.0
    %693 = vmatprep.subr.mxu0 0.0
    %694 = vmatpush2.msra.mxu0 0.0
    %695 = vmatprep.subr.mxu0 0.0
    %696 = vmatpush2.msra.mxu0 0.0
    %697 = vmatprep.subr.mxu0 0.0
    %698 = vmatpush2.msra.mxu0 0.0
    %699 = vmatprep.subr.mxu0 0.0
    %700 = vmatpush2.msra.mxu0 0.0
    %701 = vmatprep.subr.mxu0 0.0
    %702 = vmatpush2.msra.mxu0 0.0
    %703 = vmatprep.subr.mxu0 0.0
    %704 = vmatpush2.msra.mxu0 0.0
    %705 = vmatprep.subr.mxu0 0.0
    %706 = vmatpush2.msra.mxu0 0.0
    %707 = vmatprep.subr.mxu0 0.0
    %708 = vmatpush2.msra.mxu0 0.0
    %709 = vmatprep.subr.mxu0 0.0
    %710 = vmatpush2.msra.mxu0 0.0
    %711 = vmatprep.subr.mxu0 0.0
    %712 = vmatpush2.msra.mxu0 0.0
    %713 = vmatprep.subr.mxu0 0.0
    %714 = vmatpush2.msra.mxu0 0.0
    %715 = vmatprep.subr.mxu0 0.0
    %716 = vmatpush2.msra.mxu0 0.0
    %717 = vmatprep.mubr.f32.mxu0 0.0
    %718 = vmatmul.mubr.f32.gmra.mxu0 %v608
    %v719 = vpop.f32.mrf.mxu0
    %v720 = vadd.f32 %v646, %v719
    %v721 = vpop.f32.mrf.mxu0
    %v722 = vadd.f32 %v650, %v721
    %723 = vdwg.mxu0
    %v724 = vtanh.pop %v720
    %v725 = vtanh.pop %v722
    %v726 = vld [vmem:[%s11] sm:$0xff]
    %v727 = vld [vmem:[%s11 + $0x8] sm:$0xff]
    %v728 = vld [vmem:[%s11 + $0x10] sm:$0xff]
    %v729 = vld [vmem:[%s11 + $0x18] sm:$0xff]
    %v730 = vld [vmem:[%s11 + $0x20] sm:$0xff]
    %v731 = vld [vmem:[%s11 + $0x28] sm:$0xff]
    %v732 = vld [vmem:[%s11 + $0x30] sm:$0xff]
    %v733 = vld [vmem:[%s11 + $0x38] sm:$0xff]
    %v734 = vld [vmem:[%s11 + $0x40] sm:$0xff]
    %v735 = vld [vmem:[%s11 + $0x48] sm:$0xff]
    %v736 = vld [vmem:[%s11 + $0x50] sm:$0xff]
    %v737 = vld [vmem:[%s11 + $0x58] sm:$0xff]
    %v738 = vld [vmem:[%s11 + $0x60] sm:$0xff]
    %v739 = vld [vmem:[%s11 + $0x68] sm:$0xff]
    %v740 = vld [vmem:[%s11 + $0x70] sm:$0xff]
    %v741 = vld [vmem:[%s11 + $0x78] sm:$0xff]
    %v742 = vld [vmem:[%s11 + $0x80] sm:$0xff]
    %v743 = vld [vmem:[%s11 + $0x88] sm:$0xff]
    %v744 = vld [vmem:[%s11 + $0x90] sm:$0xff]
    %v745 = vld [vmem:[%s11 + $0x98] sm:$0xff]
    %v746 = vld [vmem:[%s11 + $0xa0] sm:$0xff]
    %v747 = vld [vmem:[%s11 + $0xa8] sm:$0xff]
    %v748 = vld [vmem:[%s11 + $0xb0] sm:$0xff]
    %v749 = vld [vmem:[%s11 + $0xb8] sm:$0xff]
    %v750 = vld [vmem:[%s11 + $0xc0] sm:$0xff]
    %v751 = vld [vmem:[%s11 + $0xc8] sm:$0xff]
    %v752 = vld [vmem:[%s11 + $0xd0] sm:$0xff]
    %v753 = vld [vmem:[%s11 + $0xd8] sm:$0xff]
    %v754 = vld [vmem:[%s11 + $0xe0] sm:$0xff]
    %v755 = vld [vmem:[%s11 + $0xe8] sm:$0xff]
    %v756 = vld [vmem:[%s11 + $0xf0] sm:$0xff]
    %v757 = vld [vmem:[%s11 + $0xf8] sm:$0xff]
    %v758 = vld [vmem:[%s11 + $0x100] sm:$0xff]
    %v759 = vld [vmem:[%s11 + $0x108] sm:$0xff]
    %v760 = vld [vmem:[%s11 + $0x110] sm:$0xff]
    %v761 = vld [vmem:[%s11 + $0x118] sm:$0xff]
    %v762 = vld [vmem:[%s11 + $0x120] sm:$0xff]
    %v763 = vld [vmem:[%s11 + $0x128] sm:$0xff]
    %v764 = vld [vmem:[%s11 + $0x130] sm:$0xff]
    %v765 = vld [vmem:[%s11 + $0x138] sm:$0xff]
    %v766 = vld [vmem:[%s11 + $0x140] sm:$0xff]
    %v767 = vld [vmem:[%s11 + $0x148] sm:$0xff]
    %v768 = vld [vmem:[%s11 + $0x150] sm:$0xff]
    %v769 = vld [vmem:[%s11 + $0x158] sm:$0xff]
    %v770 = vld [vmem:[%s11 + $0x160] sm:$0xff]
    %v771 = vld [vmem:[%s11 + $0x168] sm:$0xff]
    %v772 = vld [vmem:[%s11 + $0x170] sm:$0xff]
    %v773 = vld [vmem:[%s11 + $0x178] sm:$0xff]
    %v774 = vld [vmem:[%s11 + $0x180] sm:$0xff]
    %v775 = vld [vmem:[%s11 + $0x188] sm:$0xff]
    %v776 = vld [vmem:[%s11 + $0x190] sm:$0xff]
    %v777 = vld [vmem:[%s11 + $0x198] sm:$0xff]
    %v778 = vld [vmem:[%s11 + $0x1a0] sm:$0xff]
    %v779 = vld [vmem:[%s11 + $0x1a8] sm:$0xff]
    %v780 = vld [vmem:[%s11 + $0x1b0] sm:$0xff]
    %v781 = vld [vmem:[%s11 + $0x1b8] sm:$0xff]
    %v782 = vld [vmem:[%s11 + $0x1c0] sm:$0xff]
    %v783 = vld [vmem:[%s11 + $0x1c8] sm:$0xff]
    %v784 = vld [vmem:[%s11 + $0x1d0] sm:$0xff]
    %v785 = vld [vmem:[%s11 + $0x1d8] sm:$0xff]
    %v786 = vld [vmem:[%s11 + $0x1e0] sm:$0xff]
    %v787 = vld [vmem:[%s11 + $0x1e8] sm:$0xff]
    %v788 = vld [vmem:[%s11 + $0x1f0] sm:$0xff]
    %v789 = vld [vmem:[%s11 + $0x1f8] sm:$0xff]
    %v790 = vld [vmem:[%s11 + $0x200] sm:$0xff]
    %v791 = vld [vmem:[%s11 + $0x208] sm:$0xff]
    %v792 = vld [vmem:[%s11 + $0x210] sm:$0xff]
    %v793 = vld [vmem:[%s11 + $0x218] sm:$0xff]
    %v794 = vld [vmem:[%s11 + $0x220] sm:$0xff]
    %v795 = vld [vmem:[%s11 + $0x228] sm:$0xff]
    %v796 = vld [vmem:[%s11 + $0x230] sm:$0xff]
    %v797 = vld [vmem:[%s11 + $0x238] sm:$0xff]
    %v798 = vld [vmem:[%s11 + $0x240] sm:$0xff]
    %v799 = vld [vmem:[%s11 + $0x248] sm:$0xff]
    %v800 = vld [vmem:[%s11 + $0x250] sm:$0xff]
    %v801 = vld [vmem:[%s11 + $0x258] sm:$0xff]
    %v802 = vld [vmem:[%s11 + $0x260] sm:$0xff]
    %v803 = vld [vmem:[%s11 + $0x268] sm:$0xff]
    %v804 = vld [vmem:[%s11 + $0x270] sm:$0xff]
    %v805 = vld [vmem:[%s11 + $0x278] sm:$0xff]
    %v806 = vld [vmem:[%s11 + $0x280] sm:$0xff]
    %v807 = vld [vmem:[%s11 + $0x288] sm:$0xff]
    %v808 = vld [vmem:[%s11 + $0x290] sm:$0xff]
    %v809 = vld [vmem:[%s11 + $0x298] sm:$0xff]
    %v810 = vld [vmem:[%s11 + $0x2a0] sm:$0xff]
    %v811 = vld [vmem:[%s11 + $0x2a8] sm:$0xff]
    %v812 = vld [vmem:[%s11 + $0x2b0] sm:$0xff]
    %v813 = vld [vmem:[%s11 + $0x2b8] sm:$0xff]
    %v814 = vld [vmem:[%s11 + $0x2c0] sm:$0xff]
    %v815 = vld [vmem:[%s11 + $0x2c8] sm:$0xff]
    %v816 = vld [vmem:[%s11 + $0x2d0] sm:$0xff]
    %v817 = vld [vmem:[%s11 + $0x2d8] sm:$0xff]
    %v818 = vld [vmem:[%s11 + $0x2e0] sm:$0xff]
    %v819 = vld [vmem:[%s11 + $0x2e8] sm:$0xff]
    %v820 = vld [vmem:[%s11 + $0x2f0] sm:$0xff]
    %v821 = vld [vmem:[%s11 + $0x2f8] sm:$0xff]
    %v822 = vld [vmem:[%s11 + $0x300] sm:$0xff]
    %v823 = vld [vmem:[%s11 + $0x308] sm:$0xff]
    %v824 = vld [vmem:[%s11 + $0x310] sm:$0xff]
    %v825 = vld [vmem:[%s11 + $0x318] sm:$0xff]
    %v826 = vld [vmem:[%s11 + $0x320] sm:$0xff]
    %v827 = vld [vmem:[%s11 + $0x328] sm:$0xff]
    %v828 = vld [vmem:[%s11 + $0x330] sm:$0xff]
    %v829 = vld [vmem:[%s11 + $0x338] sm:$0xff]
    %v830 = vld [vmem:[%s11 + $0x340] sm:$0xff]
    %v831 = vld [vmem:[%s11 + $0x348] sm:$0xff]
    %v832 = vld [vmem:[%s11 + $0x350] sm:$0xff]
    %v833 = vld [vmem:[%s11 + $0x358] sm:$0xff]
    %v834 = vld [vmem:[%s11 + $0x360] sm:$0xff]
    %v835 = vld [vmem:[%s11 + $0x368] sm:$0xff]
    %v836 = vld [vmem:[%s11 + $0x370] sm:$0xff]
    %v837 = vld [vmem:[%s11 + $0x378] sm:$0xff]
    %v838 = vld [vmem:[%s11 + $0x380] sm:$0xff]
    %v839 = vld [vmem:[%s11 + $0x388] sm:$0xff]
    %v840 = vld [vmem:[%s11 + $0x390] sm:$0xff]
    %v841 = vld [vmem:[%s11 + $0x398] sm:$0xff]
    %v842 = vld [vmem:[%s11 + $0x3a0] sm:$0xff]
    %v843 = vld [vmem:[%s11 + $0x3a8] sm:$0xff]
    %v844 = vld [vmem:[%s11 + $0x3b0] sm:$0xff]
    %v845 = vld [vmem:[%s11 + $0x3b8] sm:$0xff]
    %v846 = vld [vmem:[%s11 + $0x3c0] sm:$0xff]
    %v847 = vld [vmem:[%s11 + $0x3c8] sm:$0xff]
    %v848 = vld [vmem:[%s11 + $0x3d0] sm:$0xff]
    %v849 = vld [vmem:[%s11 + $0x3d8] sm:$0xff]
    %v850 = vld [vmem:[%s11 + $0x3e0] sm:$0xff]
    %v851 = vld [vmem:[%s11 + $0x3e8] sm:$0xff]
    %v852 = vld [vmem:[%s11 + $0x3f0] sm:$0xff]
    %v853 = vld [vmem:[%s11 + $0x3f8] sm:$0xff]
    %v854 = vld [vmem:[%s12] sm:$0xf]
    %v856 = vlaneseq
    %v857 = vshrl.u32 %v856, 7
    %v858 = vsub.s32 0, %v857
    %v859 = vrot.slane %v854, %v858
    %v860 = vlaneseq
    %v861 = vshrl.u32 %v860, 7
    %v862 = vsub.s32 1, %v861
    %v863 = vrot.slane %v854, %v862
    %v864 = vlaneseq
    %v865 = vshrl.u32 %v864, 7
    %v866 = vsub.s32 2, %v865
    %v867 = vrot.slane %v854, %v866
    %v868 = vlaneseq
    %v869 = vshrl.u32 %v868, 7
    %v870 = vsub.s32 3, %v869
    %v871 = vrot.slane %v854, %v870
    %876 = vmatprep.subr.mxu0 %v787
    %877 = vmatpush1.msra.mxu0 %v786
    %878 = vmatprep.subr.mxu0 %v783
    %879 = vmatpush1.msra.mxu0 %v782
    %880 = vmatprep.subr.mxu0 %v779
    %881 = vmatpush1.msra.mxu0 %v778
    %882 = vmatprep.subr.mxu0 %v775
    %883 = vmatpush1.msra.mxu0 %v774
    %884 = vmatprep.subr.mxu0 %v771
    %885 = vmatpush1.msra.mxu0 %v770
    %886 = vmatprep.subr.mxu0 %v767
    %887 = vmatpush1.msra.mxu0 %v766
    %888 = vmatprep.subr.mxu0 %v763
    %889 = vmatpush1.msra.mxu0 %v762
    %890 = vmatprep.subr.mxu0 %v759
    %891 = vmatpush1.msra.mxu0 %v758
    %892 = vmatprep.subr.mxu0 %v755
    %893 = vmatpush1.msra.mxu0 %v754
    %894 = vmatprep.subr.mxu0 %v751
    %895 = vmatpush1.msra.mxu0 %v750
    %896 = vmatprep.subr.mxu0 %v747
    %897 = vmatpush1.msra.mxu0 %v746
    %898 = vmatprep.subr.mxu0 %v743
    %899 = vmatpush1.msra.mxu0 %v742
    %900 = vmatprep.subr.mxu0 %v739
    %901 = vmatpush1.msra.mxu0 %v738
    %902 = vmatprep.subr.mxu0 %v735
    %903 = vmatpush1.msra.mxu0 %v734
    %904 = vmatprep.subr.mxu0 %v731
    %905 = vmatpush1.msra.mxu0 %v730
    %906 = vmatprep.subr.mxu0 %v727
    %907 = vmatpush1.msra.mxu0 %v726
    %908 = vmatprep.subr.mxu0 %v851
    %909 = vmatpush2.msra.mxu0 %v850
    %910 = vmatprep.subr.mxu0 %v847
    %911 = vmatpush2.msra.mxu0 %v846
    %912 = vmatprep.subr.mxu0 %v843
    %913 = vmatpush2.msra.mxu0 %v842
    %914 = vmatprep.subr.mxu0 %v839
    %915 = vmatpush2.msra.mxu0 %v838
    %916 = vmatprep.subr.mxu0 %v835
    %917 = vmatpush2.msra.mxu0 %v834
    %918 = vmatprep.subr.mxu0 %v831
    %919 = vmatpush2.msra.mxu0 %v830
    %920 = vmatprep.subr.mxu0 %v827
    %921 = vmatpush2.msra.mxu0 %v826
    %922 = vmatprep.subr.mxu0 %v823
    %923 = vmatpush2.msra.mxu0 %v822
    %924 = vmatprep.subr.mxu0 %v819
    %925 = vmatpush2.msra.mxu0 %v818
    %926 = vmatprep.subr.mxu0 %v815
    %927 = vmatpush2.msra.mxu0 %v814
    %928 = vmatprep.subr.mxu0 %v811
    %929 = vmatpush2.msra.mxu0 %v810
    %930 = vmatprep.subr.mxu0 %v807
    %931 = vmatpush2.msra.mxu0 %v806
    %932 = vmatprep.subr.mxu0 %v803
    %933 = vmatpush2.msra.mxu0 %v802
    %934 = vmatprep.subr.mxu0 %v799
    %935 = vmatpush2.msra.mxu0 %v798
    %936 = vmatprep.subr.mxu0 %v795
    %937 = vmatpush2.msra.mxu0 %v794
    %938 = vmatprep.subr.mxu0 %v791
    %939 = vmatpush2.msra.mxu0 %v790
    %940 = vmatprep.mubr.f32.mxu0 %v725
    %941 = vmatmul.mubr.f32.gmra.mxu0 %v724
    %v942 = vpop.f32.mrf.mxu0
    %v943 = vadd.f32 %v859, %v942
    %v944 = vpop.f32.mrf.mxu0
    %v945 = vadd.f32 %v863, %v944
    %946 = vdwg.mxu0
    %947 = vmatprep.subr.mxu0 %v789
    %948 = vmatpush1.msra.mxu0 %v788
    %949 = vmatprep.subr.mxu0 %v785
    %950 = vmatpush1.msra.mxu0 %v784
    %951 = vmatprep.subr.mxu0 %v781
    %952 = vmatpush1.msra.mxu0 %v780
    %953 = vmatprep.subr.mxu0 %v777
    %954 = vmatpush1.msra.mxu0 %v776
    %955 = vmatprep.subr.mxu0 %v773
    %956 = vmatpush1.msra.mxu0 %v772
    %957 = vmatprep.subr.mxu0 %v769
    %958 = vmatpush1.msra.mxu0 %v768
    %959 = vmatprep.subr.mxu0 %v765
    %960 = vmatpush1.msra.mxu0 %v764
    %961 = vmatprep.subr.mxu0 %v761
    %962 = vmatpush1.msra.mxu0 %v760
    %963 = vmatprep.subr.mxu0 %v757
    %964 = vmatpush1.msra.mxu0 %v756
    %965 = vmatprep.subr.mxu0 %v753
    %966 = vmatpush1.msra.mxu0 %v752
    %967 = vmatprep.subr.mxu0 %v749
    %968 = vmatpush1.msra.mxu0 %v748
    %969 = vmatprep.subr.mxu0 %v745
    %970 = vmatpush1.msra.mxu0 %v744
    %971 = vmatprep.subr.mxu0 %v741
    %972 = vmatpush1.msra.mxu0 %v740
    %973 = vmatprep.subr.mxu0 %v737
    %974 = vmatpush1.msra.mxu0 %v736
    %975 = vmatprep.subr.mxu0 %v733
    %976 = vmatpush1.msra.mxu0 %v732
    %977 = vmatprep.subr.mxu0 %v729
    %978 = vmatpush1.msra.mxu0 %v728
    %979 = vmatprep.subr.mxu0 %v853
    %980 = vmatpush2.msra.mxu0 %v852
    %981 = vmatprep.subr.mxu0 %v849
    %982 = vmatpush2.msra.mxu0 %v848
    %983 = vmatprep.subr.mxu0 %v845
    %984 = vmatpush2.msra.mxu0 %v844
    %985 = vmatprep.subr.mxu0 %v841
    %986 = vmatpush2.msra.mxu0 %v840
    %987 = vmatprep.subr.mxu0 %v837
    %988 = vmatpush2.msra.mxu0 %v836
    %989 = vmatprep.subr.mxu0 %v833
    %990 = vmatpush2.msra.mxu0 %v832
    %991 = vmatprep.subr.mxu0 %v829
    %992 = vmatpush2.msra.mxu0 %v828
    %993 = vmatprep.subr.mxu0 %v825
    %994 = vmatpush2.msra.mxu0 %v824
    %995 = vmatprep.subr.mxu0 %v821
    %996 = vmatpush2.msra.mxu0 %v820
    %997 = vmatprep.subr.mxu0 %v817
    %998 = vmatpush2.msra.mxu0 %v816
    %999 = vmatprep.subr.mxu0 %v813
    %1000 = vmatpush2.msra.mxu0 %v812
    %1001 = vmatprep.subr.mxu0 %v809
    %1002 = vmatpush2.msra.mxu0 %v808
    %1003 = vmatprep.subr.mxu0 %v805
    %1004 = vmatpush2.msra.mxu0 %v804
    %1005 = vmatprep.subr.mxu0 %v801
    %1006 = vmatpush2.msra.mxu0 %v800
    %1007 = vmatprep.subr.mxu0 %v797
    %1008 = vmatpush2.msra.mxu0 %v796
    %1009 = vmatprep.subr.mxu0 %v793
    %1010 = vmatpush2.msra.mxu0 %v792
    %1011 = vmatprep.mubr.f32.mxu0 %v725
    %1012 = vmatmul.mubr.f32.gmra.mxu0 %v724
    %v1013 = vpop.f32.mrf.mxu0
    %v1014 = vadd.f32 %v867, %v1013
    %v1015 = vpop.f32.mrf.mxu0
    %v1016 = vadd.f32 %v871, %v1015
    %1017 = vdwg.mxu0
    %v1018 = vxor.u32 %v943, 2147483648
    %v1019 = vxor.u32 %v945, 2147483648
    %v1020 = vxor.u32 %v1014, 2147483648
    %v1021 = vxor.u32 %v1016, 2147483648
    %v1022 = vmul.f32 %v1018, 1.442695
    %v1023 = vpow.pop %v1022
    %v1024 = vmul.f32 %v1019, 1.442695
    %v1025 = vpow.pop %v1024
    %v1026 = vmul.f32 %v1020, 1.442695
    %v1027 = vpow.pop %v1026
    %v1028 = vmul.f32 %v1021, 1.442695
    %v1029 = vpow.pop %v1028
    %v1030 = vadd.f32 %v1023, 1.0
    %v1031 = vadd.f32 %v1025, 1.0
    %v1032 = vadd.f32 %v1027, 1.0
    %v1033 = vadd.f32 %v1029, 1.0
    %v1034 = vrcp.pop %v1030
    %v1035 = vmul.f32 1.0, %v1034
    %v1036 = vrcp.pop %v1031
    %v1037 = vmul.f32 1.0, %v1036
    %v1038 = vrcp.pop %v1032
    %v1039 = vmul.f32 1.0, %v1038
    %v1040 = vrcp.pop %v1033
    %v1041 = vmul.f32 1.0, %v1040
    %vm1042 = vcmask 203776
    %1043 = vst.msk [vmem:[#allocation2] sm:$0xff] %vm1042, %v512
    %1044 = vst [vmem:[#allocation4] sm:$0xff] %v1035
    %1045 = vst [vmem:[#allocation4 + $0x8] sm:$0xff] %v1037
    %1046 = vst [vmem:[#allocation4 + $0x10] sm:$0xff] %v1039
    %1047 = vst.msk [vmem:[#allocation4 + $0x18] sm:$0xff] %vm164, %v1041
    // Predicated region
    $region54: #{_autoencoder_forward_jit.1} parent=1 // pred_check
      _
    $region55: #{_autoencoder_forward_jit.1} parent=1 // pred_check_branch
      %1049 = sbr.rel (0) target = $region57
    $region56: #{_autoencoder_forward_jit.1} parent=1 // pred_region
      %s1051 = ssub.s32 128, 128
      %1052 = vsyncadd [#allocation3], %s1051
      %s1054 = sshll.u32 [#allocation2], 4
      %s1055 = int_to_ptr.vmem [resolvable:$true] %s1054
      %1057 = dma.vmem_to_hbm [thread:$0]  %s1055, 128, %s13, [#allocation3]
    $region57: #{_autoencoder_forward_jit.1} parent=1 // pred_fallthru
      _
    // Predicated region
    $region58: #{_autoencoder_forward_jit.1} parent=1 // pred_check
      _
    $region59: #{_autoencoder_forward_jit.1} parent=1 // pred_check_branch
      %1059 = sbr.rel (0) target = $region61
    $region60: #{_autoencoder_forward_jit.1} parent=1 // pred_region
      %s1061 = ssub.s32 512, 512
      %1062 = vsyncadd [#allocation5], %s1061
      %s1064 = sshll.u32 [#allocation4], 4
      %s1065 = int_to_ptr.vmem [resolvable:$true] %s1064
      %1067 = dma.vmem_to_hbm [thread:$0]  %s1065, 512, %s14, [#allocation5]
    $region61: #{_autoencoder_forward_jit.1} parent=1 // pred_fallthru
      _
    // Predicated region
    $region62: #{_autoencoder_forward_jit.1} parent=1 // pred_check
      _
    $region63: #{_autoencoder_forward_jit.1} parent=1 // pred_check_branch
      %1069 = sbr.rel (0) target = $region65
    $region64: #{_autoencoder_forward_jit.1} parent=1 // pred_region
      %1070 = dma.done [#allocation3], 128
    $region65: #{_autoencoder_forward_jit.1} parent=1 // pred_fallthru
      _
    // Predicated region
    $region66: #{_autoencoder_forward_jit.1} parent=1 // pred_check
      _
    $region67: #{_autoencoder_forward_jit.1} parent=1 // pred_check_branch
      %1072 = sbr.rel (0) target = $region69
    $region68: #{_autoencoder_forward_jit.1} parent=1 // pred_region
      %1073 = dma.done [#allocation5], 512
    $region69: #{_autoencoder_forward_jit.1} parent=1 // pred_fallthru
      _
    %1074 = vsyncpa [#allocation3], 1
    %1075 = vsyncpa [#allocation5], 1

</llo_original>
